<compile_context>
chip_gen: v7x
topology: tpu7x:2x2x1
jax: 0.10.0
libtpu: 0.0.40
codegen_flags: <defaults>
</compile_context>

<pallas_src>
import functools

import jax
import jax.numpy as jnp
from jax.experimental import pallas as pl
from jax.experimental.pallas import tpu as pltpu


def _dice_partial_kernel(x_ref, t_ref, out_ref, *, r_total, tile_r, ragged):
    """Write lane-wise partial sums (p*t, p*p, t*t) for one grid step.

    x_ref  : (tile_n, 1, tile_r, L) logits block (channel 0 only, native dtype)
    t_ref  : (tile_n, tile_r, L)    targets block (native dtype)
    out_ref: (1, 1, 3, L)           this step's lane-wise partial sums (f32)
    """
    tile_n, _, tr, lanes = x_ref.shape
    rows = tile_n * tr

    logits = x_ref[...][:, 0]                                   # (tile_n, tr, L)
    pred = jax.nn.sigmoid(logits.astype(jnp.float32)).reshape(rows, lanes)
    tgt = t_ref[...].astype(jnp.float32).reshape(rows, lanes)

    def write(p, t):
        out_ref[0, 0, 0:1, :] = jnp.sum(p * t, axis=0, keepdims=True)  # intersect
        out_ref[0, 0, 1:2, :] = jnp.sum(p * p, axis=0, keepdims=True)  # sum p^2
        out_ref[0, 0, 2:3, :] = jnp.sum(t * t, axis=0, keepdims=True)  # sum t^2

    if not ragged:
        write(pred, tgt)
    else:
        # Raggedness only occurs with tile_n == 1 (enforced by the wrapper), so
        # rows == tile_r and the row iota indexes the R axis directly.
        ri = pl.program_id(1)
        is_last = ri == pl.num_programs(1) - 1

        @pl.when(jnp.logical_not(is_last))
        def _full():
            write(pred, tgt)

        @pl.when(is_last)
        def _masked():
            row = jax.lax.broadcasted_iota(jnp.int32, pred.shape, 0)
            valid = (ri * tile_r + row) < r_total
            # Select (not multiply): overhang rows hold unspecified data and
            # sigmoid of garbage may be NaN/Inf; jnp.where discards it.
            write(jnp.where(valid, pred, 0.0), jnp.where(valid, tgt, 0.0))


def dice_loss(inputs, targets, *, smooth=1.0, max_tile_elems=256 * 1024):
    """inputs: (N, C, H, W) logits; targets: (N, H, W). Returns scalar f32.

    Inputs may be any float/int dtype (pass bf16 logits / int8 targets to cut
    HBM traffic); all in-kernel math and accumulation is f32.
    """
    n, c, h, w = inputs.shape
    assert targets.shape == (n, h, w), (inputs.shape, targets.shape)

    # Lane-dense spatial view: free reshape of contiguous trailing dims.
    s = h * w
    lanes = 128 if s % 128 == 0 else w
    r = s // lanes
    x = inputs.reshape(n, c, r, lanes)
    t = targets.reshape(n, r, lanes)

    # Row/batch tiling: aim for >= ~1 MiB per input per grid step.  row_align=32
    # keeps the sublane dim legal for f32 / bf16 / int8 blocks alike.
    row_align = 32
    if r * lanes <= max_tile_elems:
        tile_r = r
        tile_n = 1
        for d in range(n, 0, -1):            # largest divisor of N within budget
            if n % d == 0 and d * r * lanes <= max_tile_elems:
                tile_n = d
                break
    else:
        tile_n = 1
        tile_r = max(row_align, (max_tile_elems // lanes) // row_align * row_align)
        tile_r = min(tile_r, r)

    nb = n // tile_n
    rt = pl.cdiv(r, tile_r)
    ragged = (r % tile_r) != 0
    assert not ragged or tile_n == 1

    kernel = functools.partial(_dice_partial_kernel,
                               r_total=r, tile_r=tile_r, ragged=ragged)

    partials = pl.pallas_call(
        kernel,
        out_shape=jax.ShapeDtypeStruct((nb, rt, 3, lanes), jnp.float32),
        grid_spec=pltpu.PrefetchScalarGridSpec(
            num_scalar_prefetch=0,
            grid=(nb, rt),
            in_specs=[
                # Channel 0 selected here (channel block index pinned to 0), so
                # only 1/C of the logits ever crosses HBM->VMEM.
                pl.BlockSpec((tile_n, 1, tile_r, lanes),
                             lambda b, ri: (b, 0, ri, 0)),
                pl.BlockSpec((tile_n, tile_r, lanes),
                             lambda b, ri: (b, ri, 0)),
            ],
            out_specs=pl.BlockSpec((1, 1, 3, lanes),
                                   lambda b, ri: (b, ri, 0, 0)),
        ),
        compiler_params=pltpu.CompilerParams(
            dimension_semantics=("parallel", "parallel")),
    )(x, t)

    # Tiny JAX epilogue: cross-lane / cross-step reduce + dice formula.  `smooth`
    # never enters the kernel, so changing it never recompiles it.
    sums = jnp.sum(partials, axis=(0, 1, 3))          # (3,) f32
    inter, pred_sq, tgt_sq = sums[0], sums[1], sums[2]
    return 1.0 - (2.0 * inter + smooth) / (pred_sq + tgt_sq + smooth)


def dice_loss_ref(inputs, targets, smooth=1.0):
    """Pure-JAX reference mirroring the PyTorch forward."""
    preds = jax.nn.sigmoid(inputs.astype(jnp.float32))
    pred = preds[:, 0]
    tgt = targets.astype(jnp.float32)
    inter = jnp.sum(pred * tgt)
    return 1.0 - (2.0 * inter + smooth) / (
        jnp.sum(pred * pred) + jnp.sum(tgt * tgt) + smooth)


if __name__ == "__main__":
    # DiceLoss(num_classes=2, class_weight=None, smooth=1) — class_weight is
    # unused by the forward pass; only channel 0 of the logits matters.
    num_classes = 2
    smooth = 1.0

    key = jax.random.PRNGKey(0)
    k1, k2, k3, k4, k5, k6 = jax.random.split(key, 6)

    # Case 1: small f32 inputs, lane-dense path (H*W % 128 == 0), batch-blocked.
    N, C, H, W = 2, num_classes, 16, 16
    x1 = jax.random.normal(k1, (N, C, H, W), dtype=jnp.float32)
    t1 = jax.random.bernoulli(k2, 0.5, (N, H, W)).astype(jnp.float32)
    out1 = dice_loss(x1, t1, smooth=smooth)
    jax.block_until_ready(out1)
    ref1 = dice_loss_ref(x1, t1, smooth)
    assert jnp.allclose(out1, ref1, atol=1e-5, rtol=1e-5), (out1, ref1)

    # Case 2: narrow dtypes (bf16 logits, int8 targets), row tiling with a
    # ragged, pl.when-gated last tile (tiny budget forces multiple row tiles).
    N2, H2, W2 = 2, 80, 80
    x2 = jax.random.normal(k3, (N2, C, H2, W2), dtype=jnp.float32).astype(jnp.bfloat16)
    t2 = jax.random.bernoulli(k4, 0.5, (N2, H2, W2)).astype(jnp.int8)
    out2 = dice_loss(x2, t2, smooth=smooth, max_tile_elems=32 * 128)
    jax.block_until_ready(out2)
    ref2 = dice_loss_ref(x2, t2, smooth)
    assert jnp.allclose(out2, ref2, atol=1e-4, rtol=1e-4), (out2, ref2)

    # Case 3: fallback layout when H*W is not a multiple of 128 (lanes = W).
    N3, H3, W3 = 2, 12, 12
    x3 = jax.random.normal(k5, (N3, C, H3, W3), dtype=jnp.float32)
    t3 = jax.random.bernoulli(k6, 0.5, (N3, H3, W3)).astype(jnp.float32)
    out3 = dice_loss(x3, t3, smooth=smooth)
    jax.block_until_ready(out3)
    ref3 = dice_loss_ref(x3, t3, smooth)
    assert jnp.allclose(out3, ref3, atol=1e-5, rtol=1e-5), (out3, ref3)

    print("KERNEL_OK")
</pallas_src>

<mosaic_0001>
module attributes {stable_mosaic.version = 11 : i64} {
  func.func @_dice_partial_kernel(%arg0: i32, %arg1: i32, %arg2: memref<2x1x2x128xf32, #tpu.memory_space<vmem>>, %arg3: memref<2x2x128xf32, #tpu.memory_space<vmem>>, %arg4: memref<1x1x3x128xf32, #tpu.memory_space<vmem>>) attributes {dimension_semantics = [#tpu.dimension_semantics<parallel>, #tpu.dimension_semantics<parallel>], iteration_bounds = array<i64: 1, 1>, scalar_prefetch = 0 : i64, scratch_operands = 0 : i64, tpu.core_type = #tpu.core_type<tc>, window_params = [{transform_indices = @transform_0, window_bounds = array<i64: 2, 1, 2, 128>}, {transform_indices = @transform_1, window_bounds = array<i64: 2, 2, 128>}, {transform_indices = @transform_2, window_bounds = array<i64: 1, 1, 3, 128>}]} {
    %c0 = arith.constant 0 : index
    %c0_0 = arith.constant 0 : index
    %c0_1 = arith.constant 0 : index
    %c0_2 = arith.constant 0 : index
    %0 = vector.load %arg2[%c0, %c0_0, %c0_1, %c0_2] : memref<2x1x2x128xf32, #tpu.memory_space<vmem>>, vector<2x1x2x128xf32>
    %1 = vector.shape_cast %0 : vector<2x1x2x128xf32> to vector<2x2x128xf32>
    %2 = arith.negf %1 : vector<2x2x128xf32>
    %3 = math.exp %2 : vector<2x2x128xf32>
    %cst = arith.constant 1.000000e+00 : f32
    %4 = vector.broadcast %cst : f32 to vector<2x2x128xf32>
    %5 = arith.addf %4, %3 : vector<2x2x128xf32>
    %6 = arith.divf %4, %5 : vector<2x2x128xf32>
    %7 = vector.shape_cast %6 : vector<2x2x128xf32> to vector<4x128xf32>
    %c0_3 = arith.constant 0 : index
    %c0_4 = arith.constant 0 : index
    %c0_5 = arith.constant 0 : index
    %8 = vector.load %arg3[%c0_3, %c0_4, %c0_5] : memref<2x2x128xf32, #tpu.memory_space<vmem>>, vector<2x2x128xf32>
    %9 = vector.shape_cast %8 : vector<2x2x128xf32> to vector<4x128xf32>
    %10 = arith.mulf %7, %9 : vector<4x128xf32>
    %cst_6 = arith.constant dense<0.000000e+00> : vector<128xf32>
    %11 = vector.multi_reduction <add>, %10, %cst_6 [0] : vector<4x128xf32> to vector<128xf32>
    %12 = vector.shape_cast %11 : vector<128xf32> to vector<1x128xf32>
    %c0_7 = arith.constant 0 : index
    %c0_8 = arith.constant 0 : index
    %c0_9 = arith.constant 0 : index
    %c0_10 = arith.constant 0 : index
    %13 = vector.load %arg4[%c0_7, %c0_8, %c0_9, %c0_10] : memref<1x1x3x128xf32, #tpu.memory_space<vmem>>, vector<1x1x1x128xf32>
    %14 = vector.shape_cast %13 : vector<1x1x1x128xf32> to vector<1x128xf32>
    %15 = vector.shape_cast %12 : vector<1x128xf32> to vector<1x1x1x128xf32>
    tpu.vector_store %arg4[%c0_7, %c0_8, %c0_9, %c0_10], %15 {strides = array<i32>} : memref<1x1x3x128xf32, #tpu.memory_space<vmem>>, vector<1x1x1x128xf32>,
    %16 = arith.mulf %7, %7 : vector<4x128xf32>
    %cst_11 = arith.constant dense<0.000000e+00> : vector<128xf32>
    %17 = vector.multi_reduction <add>, %16, %cst_11 [0] : vector<4x128xf32> to vector<128xf32>
    %18 = vector.shape_cast %17 : vector<128xf32> to vector<1x128xf32>
    %c0_12 = arith.constant 0 : index
    %c0_13 = arith.constant 0 : index
    %c1 = arith.constant 1 : index
    %c0_14 = arith.constant 0 : index
    %19 = vector.load %arg4[%c0_12, %c0_13, %c1, %c0_14] : memref<1x1x3x128xf32, #tpu.memory_space<vmem>>, vector<1x1x1x128xf32>
    %20 = vector.shape_cast %19 : vector<1x1x1x128xf32> to vector<1x128xf32>
    %21 = vector.shape_cast %18 : vector<1x128xf32> to vector<1x1x1x128xf32>
    tpu.vector_store %arg4[%c0_12, %c0_13, %c1, %c0_14], %21 {strides = array<i32>} : memref<1x1x3x128xf32, #tpu.memory_space<vmem>>, vector<1x1x1x128xf32>,
    %22 = arith.mulf %9, %9 : vector<4x128xf32>
    %cst_15 = arith.constant dense<0.000000e+00> : vector<128xf32>
    %23 = vector.multi_reduction <add>, %22, %cst_15 [0] : vector<4x128xf32> to vector<128xf32>
    %24 = vector.shape_cast %23 : vector<128xf32> to vector<1x128xf32>
    %c0_16 = arith.constant 0 : index
    %c0_17 = arith.constant 0 : index
    %c2 = arith.constant 2 : index
    %c0_18 = arith.constant 0 : index
    %25 = vector.load %arg4[%c0_16, %c0_17, %c2, %c0_18] : memref<1x1x3x128xf32, #tpu.memory_space<vmem>>, vector<1x1x1x128xf32>
    %26 = vector.shape_cast %25 : vector<1x1x1x128xf32> to vector<1x128xf32>
    %27 = vector.shape_cast %24 : vector<1x128xf32> to vector<1x1x1x128xf32>
    tpu.vector_store %arg4[%c0_16, %c0_17, %c2, %c0_18], %27 {strides = array<i32>} : memref<1x1x3x128xf32, #tpu.memory_space<vmem>>, vector<1x1x1x128xf32>,
    return
  }
  func.func @transform_0(%arg0: i32, %arg1: i32) -> (i32, i32, i32, i32) {
    %c0_i32 = arith.constant 0 : i32
    %c0_i32_0 = arith.constant 0 : i32
    %c0_i32_1 = arith.constant 0 : i32
    return %arg0, %c0_i32, %arg1, %c0_i32_0 : i32, i32, i32, i32
  }
  func.func @transform_1(%arg0: i32, %arg1: i32) -> (i32, i32, i32) {
    %c0_i32 = arith.constant 0 : i32
    %c0_i32_0 = arith.constant 0 : i32
    return %arg0, %arg1, %c0_i32 : i32, i32, i32
  }
  func.func @transform_2(%arg0: i32, %arg1: i32) -> (i32, i32, i32, i32) {
    %c0_i32 = arith.constant 0 : i32
    %c0_i32_0 = arith.constant 0 : i32
    %c0_i32_1 = arith.constant 0 : i32
    return %arg0, %arg1, %c0_i32, %c0_i32_0 : i32, i32, i32, i32
  }
}

</mosaic_0001>

<llo_original>
// kernel: tpu_custom_call.1
$region0: #{tpu_custom_call.1}
  #allocation0 [shape = 'u32[]', space=smem, size = 0x4, offset = 0x4, fixed_abs, tag = 'smem constant byte address 0x4 - core index']
  #allocation1 [shape = 'u32[144,128]{1,0:T(1,128)}', space=vmem, size = 0x12000, scoped, tag = 'internal scratch']
  %s0 = inlined_call_operand.hbm [shape: f32[2,2,2,128], index: 0, kind: input, shape index: {}]
  %s1 = inlined_call_operand.hbm [shape: f32[2,2,128], index: 1, kind: input, shape index: {}]
  %s2 = inlined_call_operand.vmem [shape: f32[1,1,3,128], index: 2, kind: output, shape index: {}]
  %s3 = sld [smem:[#allocation0]]
  $region26: #{tpu_custom_call.1} parent=0
    _
  %s5 = ssub.s32 1, %s3
  %s6 = scalar_select 0, %s5, %s3
  $region1: #{tpu_custom_call.1} parent=0
    #allocation2 [shape = 'u8[2048]{0}', space=vmem, size = 0x800, scoped, tag = 'input window, operand 0, single buffered']
    #allocation3 [shape = 's32[1]{0}', space=sflag, size = 0x4, scoped, tag = 'scoped memory for tpu_custom_call.1']
    #allocation4 [shape = 'u8[2048]{0}', space=vmem, size = 0x800, scoped, tag = 'input window, operand 1, single buffered']
    #allocation5 [shape = 's32[1]{0}', space=sflag, size = 0x4, scoped, tag = 'scoped memory for tpu_custom_call.1']
    %7 = vsyncpa [#allocation3], 0
    %8 = vsyncpa [#allocation5], 0
    // Predicated region
    $region2: #{tpu_custom_call.1} parent=1 // pred_check
      _
    $region3: #{tpu_custom_call.1} parent=1 // pred_check_branch
      %10 = sbr.rel (0) target = $region5
    $region4: #{tpu_custom_call.1} parent=1 // pred_region
      %s12 = ssub.s32 64, 64
      %13 = vsyncadd [#allocation3], %s12
      %s14 = sshll.u32 [#allocation2], 4
      %s15 = int_to_ptr.vmem [resolvable:$true] %s14
      %20 = dma.hbm_to_vmem [thread:$0]  %s0, 64, %s15, [#allocation3], 64, 32, 2
    $region5: #{tpu_custom_call.1} parent=1 // pred_fallthru
      _
    // Predicated region
    $region6: #{tpu_custom_call.1} parent=1 // pred_check
      _
    $region7: #{tpu_custom_call.1} parent=1 // pred_check_branch
      %22 = sbr.rel (0) target = $region9
    $region8: #{tpu_custom_call.1} parent=1 // pred_region
      %s24 = ssub.s32 64, 64
      %25 = vsyncadd [#allocation5], %s24
      %s26 = sshll.u32 [#allocation4], 4
      %s27 = int_to_ptr.vmem [resolvable:$true] %s26
      %32 = dma.hbm_to_vmem [thread:$0]  %s1, 64, %s27, [#allocation5], 32, 32, 2
    $region9: #{tpu_custom_call.1} parent=1 // pred_fallthru
      _
    // Predicated region
    $region10: #{tpu_custom_call.1} parent=1 // pred_check
      _
    $region11: #{tpu_custom_call.1} parent=1 // pred_check_branch
      %34 = sbr.rel (0) target = $region13
    $region12: #{tpu_custom_call.1} parent=1 // pred_region
      %35 = dma.done [#allocation3], 64
    $region13: #{tpu_custom_call.1} parent=1 // pred_fallthru
      _
    // Predicated region
    $region14: #{tpu_custom_call.1} parent=1 // pred_check
      _
    $region15: #{tpu_custom_call.1} parent=1 // pred_check_branch
      %37 = sbr.rel (0) target = $region17
    $region16: #{tpu_custom_call.1} parent=1 // pred_region
      %38 = dma.done [#allocation5], 64
    $region17: #{tpu_custom_call.1} parent=1 // pred_fallthru
      _
    %v39 = vld [vmem:[#allocation2] sm:$0x3]
    %v40 = vld [vmem:[#allocation2 + $0x2] sm:$0x3]
    %v41 = vxor.u32 %v39, 2147483648
    %v42 = vxor.u32 %v40, 2147483648
    %v43 = vmul.f32 %v41, 1.442695
    %v44 = vpow.pop %v43
    %v45 = vmul.f32 %v42, 1.442695
    %v46 = vpow.pop %v45
    %v47 = vadd.f32 %v44, 1.0
    %v48 = vadd.f32 %v46, 1.0
    %v49 = vrcp.pop %v47
    %v50 = vmul.f32 1.0, %v49
    %v51 = vrcp.pop %v48
    %v52 = vmul.f32 1.0, %v51
    %v53 = vld [vmem:[#allocation4] sm:$0x3]
    %v54 = vld [vmem:[#allocation4 + $0x2] sm:$0x3]
    %v55 = vmul.f32 %v50, %v53
    %v56 = vmul.f32 %v52, %v54
    %v59 = vcombine.low %v55, %v56
    %v61 = vunpack.c.l.s4 1983009808
    %v62 = vunpack.c.0.s8 %v61
    %v63 = vlaneseq
    %v64 = vshrl.u32 %v63, 7
    %v65 = vsub.s32 %v62, %v64
    %v66 = vrot.slane %v59, %v65
    %vm68 = vcmask 1043456
    %v69 = vsel %vm68, %v66, 0.0
    %v70 = vrot.slane %v69, 4
    %v71 = vadd.f32 %v69, %v70
    %v72 = vrot.slane %v71, 2
    %v73 = vadd.f32 %v71, %v72
    %v74 = vrot.slane %v73, 1
    %v75 = vadd.f32 %v73, %v74
    %76 = vst [vmem:[%s2] sm:$0x1] %v75
    %v77 = vmul.f32 %v50, %v50
    %v78 = vmul.f32 %v52, %v52
    %v81 = vcombine.low %v77, %v78
    %v83 = vunpack.c.l.s4 1983009808
    %v84 = vunpack.c.0.s8 %v83
    %v85 = vlaneseq
    %v86 = vshrl.u32 %v85, 7
    %v87 = vsub.s32 %v84, %v86
    %v88 = vrot.slane %v81, %v87
    %v90 = vsel %vm68, %v88, 0.0
    %v91 = vrot.slane %v90, 4
    %v92 = vadd.f32 %v90, %v91
    %v93 = vrot.slane %v92, 2
    %v94 = vadd.f32 %v92, %v93
    %v95 = vrot.slane %v94, 1
    %v96 = vadd.f32 %v94, %v95
    %97 = vst [vmem:[%s2 + $0x1] sm:$0x1] %v96
    %v98 = vmul.f32 %v53, %v53
    %v99 = vmul.f32 %v54, %v54
    %v102 = vcombine.low %v98, %v99
    %v104 = vunpack.c.l.s4 1983009808
    %v105 = vunpack.c.0.s8 %v104
    %v106 = vlaneseq
    %v107 = vshrl.u32 %v106, 7
    %v108 = vsub.s32 %v105, %v107
    %v109 = vrot.slane %v102, %v108
    %v111 = vsel %vm68, %v109, 0.0
    %v112 = vrot.slane %v111, 4
    %v113 = vadd.f32 %v111, %v112
    %v114 = vrot.slane %v113, 2
    %v115 = vadd.f32 %v113, %v114
    %v116 = vrot.slane %v115, 1
    %v117 = vadd.f32 %v115, %v116
    %118 = vst [vmem:[%s2 + $0x2] sm:$0x1] %v117
    // Predicated region
    $region18: #{tpu_custom_call.1} parent=1 // pred_check
      _
    $region19: #{tpu_custom_call.1} parent=1 // pred_check_branch
      %120 = sbr.rel (0) target = $region21
    $region20: #{tpu_custom_call.1} parent=1 // pred_region
      _
    $region21: #{tpu_custom_call.1} parent=1 // pred_fallthru
      _
    // Predicated region
    $region22: #{tpu_custom_call.1} parent=1 // pred_check
      _
    $region23: #{tpu_custom_call.1} parent=1 // pred_check_branch
      %122 = sbr.rel (0) target = $region25
    $region24: #{tpu_custom_call.1} parent=1 // pred_region
      _
    $region25: #{tpu_custom_call.1} parent=1 // pred_fallthru
      _
    %123 = vsyncpa [#allocation3], 1
    %124 = vsyncpa [#allocation5], 1

</llo_original>
